<compile_context>
chip_gen: v6e
topology: v6e:2x2x1
jax: 0.10.0
libtpu: 0.0.40
codegen_flags: <defaults>
</compile_context>

<pallas_src>
import functools

import jax
import jax.numpy as jnp
from jax.experimental import pallas as pl
from jax.experimental.pallas import tpu as pltpu


def _value_mlp_kernel(depth, *refs):
    # refs = (s_ref, wT_0, b_0, ..., wT_{depth-1}, b_{depth-1}, w_last, b_last, out_ref)
    s_ref = refs[0]                       # (tile_b, state_dim), natural layout
    out_ref = refs[-1]                    # (1, tile_b)
    param_refs = refs[1:-1]

    mxu_dtype = param_refs[0].dtype       # compute (MXU) dtype, bf16 by default

    # Cast once, then transpose the narrow tile so batch sits on lanes.
    h = s_ref[...].astype(mxu_dtype).T    # (state_dim, tile_b)

    for layer in range(depth):
        wT = param_refs[2 * layer][...]       # (out, in), pre-transposed, mxu_dtype
        b = param_refs[2 * layer + 1][...]    # (out, 1) f32 -> broadcasts over lanes
        # Keep the MXU on the low-precision fast path; accumulate in f32.
        h = jnp.dot(wT, h.astype(wT.dtype), preferred_element_type=jnp.float32)
        h = jnp.maximum(h + b, 0.0)           # bias + ReLU in f32 on the VPU

    # Final hidden -> 1: lane-broadcast multiply + sublane reduce (no N=1 matmul).
    w_last = param_refs[2 * depth][...]       # (hidden, 1) f32
    b_last = param_refs[2 * depth + 1][...]   # (1, 1) f32
    out = jnp.sum(h * w_last, axis=0, keepdims=True) + b_last
    out_ref[...] = out.astype(out_ref.dtype)  # lane-dense (1, tile_b) store


def _device_kind():
    try:
        return jax.devices()[0].device_kind.lower()
    except Exception:
        return ""


def value_mlp_forward(s, params, *, tile_b=None, compute_dtype=jnp.bfloat16,
                      vmem_limit_bytes=None):
    """s: (batch, state_dim); params: list of (W, b) with W (in, out), b (1, out).

    Returns (batch, 1), matching ValueMLP.forward(s).

    s is streamed in its given dtype/layout (pass bf16 s to halve HBM traffic);
    compute_dtype controls the MXU path (bf16 default, f32 for exact checks).
    """
    batch, state_dim = s.shape
    depth = len(params) - 1
    out_dtype = s.dtype

    kind = _device_kind()
    is_v7 = "v7" in kind

    # --- generation-aware tile / VMEM defaults --------------------------------
    if tile_b is None:
        tile_b = 32768 if is_v7 else 65536          # 64 MiB/TC vs 128 MiB VMEM
    if vmem_limit_bytes is None:
        vmem_limit_bytes = (48 << 20) if is_v7 else (96 << 20)

    # v7x: guarantee >= 2 grid steps so both TensorCores get work.
    if is_v7 and batch >= 256:
        half = ((pl.cdiv(batch, 2) + 127) // 128) * 128
        tile_b = min(tile_b, half)

    if batch <= tile_b:
        tile_b = batch                               # single full-array tile
    else:
        tile_b = max(128, (tile_b // 128) * 128)     # lane dim multiple of 128
    num_tiles = pl.cdiv(batch, tile_b)               # ragged last block is OK

    # --- params: tiny, VMEM-resident across all grid steps --------------------
    flat_params = []
    for w, b in params[:-1]:
        flat_params.append(w.T.astype(compute_dtype))                # (out, in)
        flat_params.append(b.reshape(-1, 1).astype(jnp.float32))     # (out, 1)
    w_last, b_last = params[-1]
    flat_params.append(w_last.reshape(-1, 1).astype(jnp.float32))    # (hidden, 1)
    flat_params.append(b_last.reshape(1, 1).astype(jnp.float32))     # (1, 1)

    # --- specs -----------------------------------------------------------------
    s_index_map = lambda i: (i, 0)
    s_block = (tile_b, state_dim)
    small_block = (num_tiles >= 3 and
                   tile_b * state_dim * s.dtype.itemsize < (256 << 10))
    if small_block:
        # Tiny blocks (small real batches): deepen the input pipeline.
        try:
            s_spec = pl.BlockSpec(s_block, s_index_map,
                                  pipeline_mode=pl.Buffered(3))
        except TypeError:  # older jax without pipeline_mode kwarg
            s_spec = pl.BlockSpec(s_block, s_index_map)
    else:
        s_spec = pl.BlockSpec(s_block, s_index_map)

    in_specs = [s_spec]
    for p in flat_params:
        in_specs.append(pl.BlockSpec(p.shape, lambda i: (0, 0)))

    out_shape = jax.ShapeDtypeStruct((1, batch), out_dtype)
    out_spec = pl.BlockSpec((1, tile_b), lambda i: (0, i))

    kernel = functools.partial(_value_mlp_kernel, depth)

    out_t = pl.pallas_call(
        kernel,
        out_shape=out_shape,
        grid=(num_tiles,),
        in_specs=in_specs,
        out_specs=out_spec,
        compiler_params=pltpu.CompilerParams(
            dimension_semantics=("parallel",),   # shards batch tiles across TCs
            vmem_limit_bytes=vmem_limit_bytes,
        ),
    )(s, *flat_params)

    # (1, batch) -> (batch, 1)
    return out_t.reshape(batch, 1)


def init_value_mlp_params(key, state_dim, hidden_dim, depth):
    """Deterministic init mimicking nn.Linear's U(-1/sqrt(fan_in), 1/sqrt(fan_in))."""
    dims = [state_dim] + [hidden_dim] * depth + [1]
    params = []
    for i in range(len(dims) - 1):
        fan_in, fan_out = dims[i], dims[i + 1]
        key, kw, kb = jax.random.split(key, 3)
        bound = 1.0 / jnp.sqrt(jnp.asarray(fan_in, jnp.float32))
        w = jax.random.uniform(kw, (fan_in, fan_out), jnp.float32, -bound, bound)
        b = jax.random.uniform(kb, (1, fan_out), jnp.float32, -bound, bound)
        params.append((w, b))
    return params


def value_mlp_reference(s, params):
    h = s
    for w, b in params[:-1]:
        h = jnp.maximum(h @ w + b, 0.0)
    w, b = params[-1]
    return h @ w + b


if __name__ == "__main__":
    key = jax.random.PRNGKey(0)

    # args: state_dim=16, v_hidden_width=32, v_depth=2
    batch, state_dim, hidden_dim, depth = 8, 16, 32, 2

    key, ks = jax.random.split(key)
    s = jax.random.normal(ks, (batch, state_dim), jnp.float32)
    params = init_value_mlp_params(key, state_dim, hidden_dim, depth)
    ref = value_mlp_reference(s, params)

    # 1) exact f32 compute path, single tile.
    out = jax.block_until_ready(
        value_mlp_forward(s, params, compute_dtype=jnp.float32))
    assert out.shape == (batch, 1), out.shape
    assert jnp.allclose(out, ref, atol=1e-5, rtol=1e-5), (out, ref)

    # 2) default bf16 MXU path (looser tolerance).
    out_bf16 = jax.block_until_ready(value_mlp_forward(s, params))
    assert out_bf16.shape == (batch, 1), out_bf16.shape
    assert jnp.allclose(out_bf16, ref, atol=5e-2, rtol=5e-2), (out_bf16, ref)

    # 3) tiled + ragged last block (2 grid steps, no wrapper-side padding).
    key, ks2 = jax.random.split(key)
    s2 = jax.random.normal(ks2, (200, state_dim), jnp.float32)
    out2 = jax.block_until_ready(
        value_mlp_forward(s2, params, tile_b=128, compute_dtype=jnp.float32))
    ref2 = value_mlp_reference(s2, params)
    assert out2.shape == (200, 1), out2.shape
    assert jnp.allclose(out2, ref2, atol=1e-5, rtol=1e-5)

    # 4) many small tiles -> deeper input buffering path (+ ragged last block).
    key, ks3 = jax.random.split(key)
    s3 = jax.random.normal(ks3, (1000, state_dim), jnp.float32)
    out3 = jax.block_until_ready(
        value_mlp_forward(s3, params, tile_b=128, compute_dtype=jnp.float32))
    ref3 = value_mlp_reference(s3, params)
    assert out3.shape == (1000, 1), out3.shape
    assert jnp.allclose(out3, ref3, atol=1e-5, rtol=1e-5)

    print("KERNEL_OK")
</pallas_src>

<mosaic_0001>
module attributes {stable_mosaic.version = 11 : i64} {
  func.func @_value_mlp_kernel(%arg0: i32, %arg1: memref<8x16xf32, #tpu.memory_space<vmem>>, %arg2: memref<32x16xf32, #tpu.memory_space<vmem>>, %arg3: memref<32x1xf32, #tpu.memory_space<vmem>>, %arg4: memref<32x32xf32, #tpu.memory_space<vmem>>, %arg5: memref<32x1xf32, #tpu.memory_space<vmem>>, %arg6: memref<32x1xf32, #tpu.memory_space<vmem>>, %arg7: memref<1x1xf32, #tpu.memory_space<vmem>>, %arg8: memref<1x8xf32, #tpu.memory_space<vmem>>) attributes {dimension_semantics = [#tpu.dimension_semantics<parallel>], iteration_bounds = array<i64: 1>, scalar_prefetch = 0 : i64, scratch_operands = 0 : i64, tpu.core_type = #tpu.core_type<tc>, window_params = [{transform_indices = @transform_0, window_bounds = array<i64: 8, 16>}, {pipeline_mode = #tpu.pipeline_mode<synchronous>, transform_indices = @transform_1, window_bounds = array<i64: 32, 16>}, {pipeline_mode = #tpu.pipeline_mode<synchronous>, transform_indices = @transform_2, window_bounds = array<i64: 32, 1>}, {pipeline_mode = #tpu.pipeline_mode<synchronous>, transform_indices = @transform_3, window_bounds = array<i64: 32, 32>}, {pipeline_mode = #tpu.pipeline_mode<synchronous>, transform_indices = @transform_4, window_bounds = array<i64: 32, 1>}, {pipeline_mode = #tpu.pipeline_mode<synchronous>, transform_indices = @transform_5, window_bounds = array<i64: 32, 1>}, {pipeline_mode = #tpu.pipeline_mode<synchronous>, transform_indices = @transform_6, window_bounds = array<i64: 1, 1>}, {transform_indices = @transform_7, window_bounds = array<i64: 1, 8>}]} {
    %c0 = arith.constant 0 : index
    %c0_0 = arith.constant 0 : index
    %0 = vector.load %arg1[%c0, %c0_0] : memref<8x16xf32, #tpu.memory_space<vmem>>, vector<8x16xf32>
    %1 = tpu.transpose %0, [1, 0] : vector<8x16xf32> -> vector<16x8xf32>
    %c0_1 = arith.constant 0 : index
    %c0_2 = arith.constant 0 : index
    %2 = vector.load %arg2[%c0_1, %c0_2] : memref<32x16xf32, #tpu.memory_space<vmem>>, vector<32x16xf32>
    %c0_3 = arith.constant 0 : index
    %c0_4 = arith.constant 0 : index
    %3 = vector.load %arg3[%c0_3, %c0_4] : memref<32x1xf32, #tpu.memory_space<vmem>>, vector<32x1xf32>
    %cst = arith.constant dense<0.000000e+00> : vector<32x8xf32>
    %4 = tpu.matmul %2, %1, %cst {dimension_numbers = #tpu.dot_dimension_numbers<[1], [0], [0], [1], [0, 0, 1, 1], [], []>} : vector<32x16xf32>, vector<16x8xf32>, vector<32x8xf32> -> vector<32x8xf32>
    %5 = vector.broadcast %3 : vector<32x1xf32> to vector<32x8xf32>
    %6 = arith.addf %4, %5 : vector<32x8xf32>
    %cst_5 = arith.constant 0.000000e+00 : f32
    %7 = vector.broadcast %cst_5 : f32 to vector<32x8xf32>
    %8 = arith.maximumf %6, %7 : vector<32x8xf32>
    %c0_6 = arith.constant 0 : index
    %c0_7 = arith.constant 0 : index
    %9 = vector.load %arg4[%c0_6, %c0_7] : memref<32x32xf32, #tpu.memory_space<vmem>>, vector<32x32xf32>
    %c0_8 = arith.constant 0 : index
    %c0_9 = arith.constant 0 : index
    %10 = vector.load %arg5[%c0_8, %c0_9] : memref<32x1xf32, #tpu.memory_space<vmem>>, vector<32x1xf32>
    %cst_10 = arith.constant dense<0.000000e+00> : vector<32x8xf32>
    %11 = tpu.matmul %9, %8, %cst_10 {dimension_numbers = #tpu.dot_dimension_numbers<[1], [0], [0], [1], [0, 0, 1, 1], [], []>} : vector<32x32xf32>, vector<32x8xf32>, vector<32x8xf32> -> vector<32x8xf32>
    %12 = vector.broadcast %10 : vector<32x1xf32> to vector<32x8xf32>
    %13 = arith.addf %11, %12 : vector<32x8xf32>
    %cst_11 = arith.constant 0.000000e+00 : f32
    %14 = vector.broadcast %cst_11 : f32 to vector<32x8xf32>
    %15 = arith.maximumf %13, %14 : vector<32x8xf32>
    %c0_12 = arith.constant 0 : index
    %c0_13 = arith.constant 0 : index
    %16 = vector.load %arg6[%c0_12, %c0_13] : memref<32x1xf32, #tpu.memory_space<vmem>>, vector<32x1xf32>
    %c0_14 = arith.constant 0 : index
    %c0_15 = arith.constant 0 : index
    %17 = vector.load %arg7[%c0_14, %c0_15] : memref<1x1xf32, #tpu.memory_space<vmem>>, vector<1x1xf32>
    %18 = vector.broadcast %16 : vector<32x1xf32> to vector<32x8xf32>
    %19 = arith.mulf %15, %18 : vector<32x8xf32>
    %cst_16 = arith.constant dense<0.000000e+00> : vector<8xf32>
    %20 = vector.multi_reduction <add>, %19, %cst_16 [0] : vector<32x8xf32> to vector<8xf32>
    %21 = vector.shape_cast %20 : vector<8xf32> to vector<1x8xf32>
    %22 = vector.broadcast %17 : vector<1x1xf32> to vector<1x8xf32>
    %23 = arith.addf %21, %22 : vector<1x8xf32>
    %c0_17 = arith.constant 0 : index
    %c0_18 = arith.constant 0 : index
    %24 = vector.load %arg8[%c0_17, %c0_18] : memref<1x8xf32, #tpu.memory_space<vmem>>, vector<1x8xf32>
    tpu.vector_store %arg8[%c0_17, %c0_18], %23 {strides = array<i32>} : memref<1x8xf32, #tpu.memory_space<vmem>>, vector<1x8xf32>,
    return
  }
  func.func @transform_0(%arg0: i32) -> (i32, i32) {
    %c0_i32 = arith.constant 0 : i32
    %c0_i32_0 = arith.constant 0 : i32
    return %arg0, %c0_i32 : i32, i32
  }
  func.func @transform_1(%arg0: i32) -> (i32, i32) {
    %c0_i32 = arith.constant 0 : i32
    %c0_i32_0 = arith.constant 0 : i32
    %c0_i32_1 = arith.constant 0 : i32
    return %c0_i32, %c0_i32_0 : i32, i32
  }
  func.func @transform_2(%arg0: i32) -> (i32, i32) {
    %c0_i32 = arith.constant 0 : i32
    %c0_i32_0 = arith.constant 0 : i32
    %c0_i32_1 = arith.constant 0 : i32
    return %c0_i32, %c0_i32_0 : i32, i32
  }
  func.func @transform_3(%arg0: i32) -> (i32, i32) {
    %c0_i32 = arith.constant 0 : i32
    %c0_i32_0 = arith.constant 0 : i32
    %c0_i32_1 = arith.constant 0 : i32
    return %c0_i32, %c0_i32_0 : i32, i32
  }
  func.func @transform_4(%arg0: i32) -> (i32, i32) {
    %c0_i32 = arith.constant 0 : i32
    %c0_i32_0 = arith.constant 0 : i32
    %c0_i32_1 = arith.constant 0 : i32
    return %c0_i32, %c0_i32_0 : i32, i32
  }
  func.func @transform_5(%arg0: i32) -> (i32, i32) {
    %c0_i32 = arith.constant 0 : i32
    %c0_i32_0 = arith.constant 0 : i32
    %c0_i32_1 = arith.constant 0 : i32
    return %c0_i32, %c0_i32_0 : i32, i32
  }
  func.func @transform_6(%arg0: i32) -> (i32, i32) {
    %c0_i32 = arith.constant 0 : i32
    %c0_i32_0 = arith.constant 0 : i32
    %c0_i32_1 = arith.constant 0 : i32
    return %c0_i32, %c0_i32_0 : i32, i32
  }
  func.func @transform_7(%arg0: i32) -> (i32, i32) {
    %c0_i32 = arith.constant 0 : i32
    %c0_i32_0 = arith.constant 0 : i32
    return %c0_i32, %arg0 : i32, i32
  }
}

</mosaic_0001>

<llo_original>
// kernel: tpu_custom_call.1
$region0: #{tpu_custom_call.1}
  #allocation0 [shape = 'u32[]', space=smem, size = 0x4, offset = 0x4, fixed_abs, tag = 'smem constant byte address 0x4 - core index']
  #allocation1 [shape = 'u32[144,128]{1,0:T(1,128)}', space=vmem, size = 0x12000, scoped, tag = 'internal scratch']
  #allocation2 [shape = 'f32[1,1]{1,0:T(1,128)S(1)}', space=vmem, size = 0x200, scoped, tag = 'scoped memory for tpu_custom_call.1']
  %s0 = inlined_call_operand.vmem [shape: f32[8,16], index: 0, kind: input, shape index: {}]
  %s1 = inlined_call_operand.vmem [shape: f32[32,16], index: 1, kind: input, shape index: {}]
  %s2 = inlined_call_operand.vmem [shape: f32[32,1], index: 2, kind: input, shape index: {}]
  %s3 = inlined_call_operand.vmem [shape: f32[32,32], index: 3, kind: input, shape index: {}]
  %s4 = inlined_call_operand.vmem [shape: f32[32,1], index: 4, kind: input, shape index: {}]
  %s5 = inlined_call_operand.vmem [shape: f32[32,1], index: 5, kind: input, shape index: {}]
  %s6 = inlined_call_operand.<no memory space> [shape: f32[1,1], index: 6, kind: input, shape index: {}]
  %s7 = inlined_call_operand.hbm [shape: f32[1,8], index: 7, kind: output, shape index: {}]
  %s8 = sld [smem:[#allocation0]]
  $region38: #{tpu_custom_call.1} parent=0
    _
  %s10 = ssub.s32 1, %s8
  %s11 = scalar_select 0, %s10, %s8
  %v12 = vstv %s6
  %13 = vst [vmem:[#allocation2] sm:$0x1] %v12
  $region1: #{tpu_custom_call.1} parent=0
    #allocation3 [shape = 'u8[512]{0}', space=vmem, size = 0x400, scoped, tag = 'output window, operand 0, single buffered']
    #allocation4 [shape = 's32[1]{0}', space=sflag, size = 0x4, scoped, tag = 'scoped memory for tpu_custom_call.1']
    %14 = vsyncpa [#allocation4], 0
    // Predicated region
    $region2: #{tpu_custom_call.1} parent=1 // pred_check
      _
    $region3: #{tpu_custom_call.1} parent=1 // pred_check_branch
      %16 = sbr.rel (0) target = $region5
    $region4: #{tpu_custom_call.1} parent=1 // pred_region
      _
    $region5: #{tpu_custom_call.1} parent=1 // pred_fallthru
      _
    // Predicated region
    $region6: #{tpu_custom_call.1} parent=1 // pred_check
      _
    $region7: #{tpu_custom_call.1} parent=1 // pred_check_branch
      %18 = sbr.rel (0) target = $region9
    $region8: #{tpu_custom_call.1} parent=1 // pred_region
      _
    $region9: #{tpu_custom_call.1} parent=1 // pred_fallthru
      _
    // Predicated region
    $region10: #{tpu_custom_call.1} parent=1 // pred_check
      _
    $region11: #{tpu_custom_call.1} parent=1 // pred_check_branch
      %20 = sbr.rel (0) target = $region13
    $region12: #{tpu_custom_call.1} parent=1 // pred_region
      _
    $region13: #{tpu_custom_call.1} parent=1 // pred_fallthru
      _
    // Predicated region
    $region14: #{tpu_custom_call.1} parent=1 // pred_check
      _
    $region15: #{tpu_custom_call.1} parent=1 // pred_check_branch
      %22 = sbr.rel (0) target = $region17
    $region16: #{tpu_custom_call.1} parent=1 // pred_region
      _
    $region17: #{tpu_custom_call.1} parent=1 // pred_fallthru
      _
    // Predicated region
    $region18: #{tpu_custom_call.1} parent=1 // pred_check
      _
    $region19: #{tpu_custom_call.1} parent=1 // pred_check_branch
      %24 = sbr.rel (0) target = $region21
    $region20: #{tpu_custom_call.1} parent=1 // pred_region
      _
    $region21: #{tpu_custom_call.1} parent=1 // pred_fallthru
      _
    // Predicated region
    $region22: #{tpu_custom_call.1} parent=1 // pred_check
      _
    $region23: #{tpu_custom_call.1} parent=1 // pred_check_branch
      %26 = sbr.rel (0) target = $region25
    $region24: #{tpu_custom_call.1} parent=1 // pred_region
      _
    $region25: #{tpu_custom_call.1} parent=1 // pred_fallthru
      _
    // Predicated region
    $region26: #{tpu_custom_call.1} parent=1 // pred_check
      _
    $region27: #{tpu_custom_call.1} parent=1 // pred_check_branch
      %28 = sbr.rel (0) target = $region29
    $region28: #{tpu_custom_call.1} parent=1 // pred_region
      _
    $region29: #{tpu_custom_call.1} parent=1 // pred_fallthru
      _
    %v29 = vld [vmem:[%s0] sm:$0xff]
    %v30 = vld [vmem:[%s1] sm:$0xff]
    %v31 = vld [vmem:[%s1 + $0x8] sm:$0xff]
    %v32 = vld [vmem:[%s1 + $0x10] sm:$0xff]
    %v33 = vld [vmem:[%s1 + $0x18] sm:$0xff]
    %v34 = vld [vmem:[%s2] sm:$0xff]
    %v35 = vld [vmem:[%s2 + $0x8] sm:$0xff]
    %v36 = vld [vmem:[%s2 + $0x10] sm:$0xff]
    %v37 = vld [vmem:[%s2 + $0x18] sm:$0xff]
    %39 = vset.pattern.permute.xlu0 0
    %40 = vperm.xlu0 %39, %v34
    %v41 = vpop.permute.xlu0 %40
    %44 = vset.pattern.permute.xlu0 0
    %45 = vperm.xlu0 %44, %v35
    %v46 = vpop.permute.xlu0 %45
    %49 = vset.pattern.permute.xlu0 0
    %50 = vperm.xlu0 %49, %v36
    %v51 = vpop.permute.xlu0 %50
    %54 = vset.pattern.permute.xlu0 0
    %55 = vperm.xlu0 %54, %v37
    %v56 = vpop.permute.xlu0 %55
    %vm58 = vcmask 130048
    %v60 = vsel %vm58, %v30, 0
    %v63 = vsel %vm58, %v31, 0
    %v66 = vsel %vm58, %v32, 0
    %v69 = vsel %vm58, %v33, 0
    %v72 = vsel %vm58, %v29, 0
    %74 = vmatprep.subr.mxu0 0.0
    %75 = vmatpush1.xpose.msra.mxu0 0.0
    %76 = vmatprep.subr.mxu0 0.0
    %77 = vmatpush1.xpose.msra.mxu0 0.0
    %78 = vmatprep.subr.mxu0 0.0
    %79 = vmatpush1.xpose.msra.mxu0 0.0
    %80 = vmatprep.subr.mxu0 0.0
    %81 = vmatpush1.xpose.msra.mxu0 0.0
    %82 = vmatprep.subr.mxu0 0.0
    %83 = vmatpush1.xpose.msra.mxu0 0.0
    %84 = vmatprep.subr.mxu0 0.0
    %85 = vmatpush1.xpose.msra.mxu0 0.0
    %86 = vmatprep.subr.mxu0 0.0
    %87 = vmatpush1.xpose.msra.mxu0 0.0
    %88 = vmatprep.subr.mxu0 0.0
    %89 = vmatpush1.xpose.msra.mxu0 0.0
    %90 = vmatprep.subr.mxu0 0.0
    %91 = vmatpush1.xpose.msra.mxu0 0.0
    %92 = vmatprep.subr.mxu0 0.0
    %93 = vmatpush1.xpose.msra.mxu0 0.0
    %94 = vmatprep.subr.mxu0 0.0
    %95 = vmatpush1.xpose.msra.mxu0 0.0
    %96 = vmatprep.subr.mxu0 0.0
    %97 = vmatpush1.xpose.msra.mxu0 0.0
    %98 = vmatprep.subr.mxu0 0.0
    %99 = vmatpush1.xpose.msra.mxu0 0.0
    %100 = vmatprep.subr.mxu0 0.0
    %101 = vmatpush1.xpose.msra.mxu0 0.0
    %102 = vmatprep.subr.mxu0 0.0
    %103 = vmatpush1.xpose.msra.mxu0 0.0
    %104 = vmatprep.subr.mxu0 0.0
    %105 = vmatpush1.xpose.msra.mxu0 %v72
    %106 = vmatprep.subr.mxu0 0.0
    %107 = vmatpush2.xpose.msra.mxu0 0.0
    %108 = vmatprep.subr.mxu0 0.0
    %109 = vmatpush2.xpose.msra.mxu0 0.0
    %110 = vmatprep.subr.mxu0 0.0
    %111 = vmatpush2.xpose.msra.mxu0 0.0
    %112 = vmatprep.subr.mxu0 0.0
    %113 = vmatpush2.xpose.msra.mxu0 0.0
    %114 = vmatprep.subr.mxu0 0.0
    %115 = vmatpush2.xpose.msra.mxu0 0.0
    %116 = vmatprep.subr.mxu0 0.0
    %117 = vmatpush2.xpose.msra.mxu0 0.0
    %118 = vmatprep.subr.mxu0 0.0
    %119 = vmatpush2.xpose.msra.mxu0 0.0
    %120 = vmatprep.subr.mxu0 0.0
    %121 = vmatpush2.xpose.msra.mxu0 0.0
    %122 = vmatprep.subr.mxu0 0.0
    %123 = vmatpush2.xpose.msra.mxu0 0.0
    %124 = vmatprep.subr.mxu0 0.0
    %125 = vmatpush2.xpose.msra.mxu0 0.0
    %126 = vmatprep.subr.mxu0 0.0
    %127 = vmatpush2.xpose.msra.mxu0 0.0
    %128 = vmatprep.subr.mxu0 0.0
    %129 = vmatpush2.xpose.msra.mxu0 0.0
    %130 = vmatprep.subr.mxu0 0.0
    %131 = vmatpush2.xpose.msra.mxu0 0.0
    %132 = vmatprep.subr.mxu0 0.0
    %133 = vmatpush2.xpose.msra.mxu0 0.0
    %134 = vmatprep.subr.mxu0 0.0
    %135 = vmatpush2.xpose.msra.mxu0 0.0
    %136 = vmatprep.subr.mxu0 0.0
    %137 = vmatpush2.xpose.msra.mxu0 0.0
    %138 = vmatprep.mubr.f32.mxu0 0.0
    %139 = vmatmul.mubr.f32.gmra.mxu0 %v60
    %v140 = vpop.f32.mrf.mxu0
    %v141 = vadd.f32 %v41, %v140
    %v142 = vpop.f32.mrf.mxu0
    %143 = vmatprep.mubr.f32.mxu0 0.0
    %144 = vmatmul.mubr.f32.gmra.mxu0 %v63
    %v145 = vpop.f32.mrf.mxu0
    %v146 = vadd.f32 %v46, %v145
    %v147 = vpop.f32.mrf.mxu0
    %148 = vmatprep.mubr.f32.mxu0 0.0
    %149 = vmatmul.mubr.f32.gmra.mxu0 %v66
    %v150 = vpop.f32.mrf.mxu0
    %v151 = vadd.f32 %v51, %v150
    %v152 = vpop.f32.mrf.mxu0
    %153 = vmatprep.mubr.f32.mxu0 0.0
    %154 = vmatmul.mubr.f32.gmra.mxu0 %v69
    %v155 = vpop.f32.mrf.mxu0
    %v156 = vadd.f32 %v56, %v155
    %v157 = vpop.f32.mrf.mxu0
    %158 = vdwg.mxu0
    %v159 = vmax.f32 %v141, 0.0
    %v160 = vmax.f32 %v146, 0.0
    %v161 = vmax.f32 %v151, 0.0
    %v162 = vmax.f32 %v156, 0.0
    %v163 = vld [vmem:[%s3] sm:$0xff]
    %v164 = vld [vmem:[%s3 + $0x8] sm:$0xff]
    %v165 = vld [vmem:[%s3 + $0x10] sm:$0xff]
    %v166 = vld [vmem:[%s3 + $0x18] sm:$0xff]
    %v167 = vld [vmem:[%s4] sm:$0xff]
    %v168 = vld [vmem:[%s4 + $0x8] sm:$0xff]
    %v169 = vld [vmem:[%s4 + $0x10] sm:$0xff]
    %v170 = vld [vmem:[%s4 + $0x18] sm:$0xff]
    %172 = vset.pattern.permute.xlu0 0
    %173 = vperm.xlu0 %172, %v167
    %v174 = vpop.permute.xlu0 %173
    %177 = vset.pattern.permute.xlu0 0
    %178 = vperm.xlu0 %177, %v168
    %v179 = vpop.permute.xlu0 %178
    %182 = vset.pattern.permute.xlu0 0
    %183 = vperm.xlu0 %182, %v169
    %v184 = vpop.permute.xlu0 %183
    %187 = vset.pattern.permute.xlu0 0
    %188 = vperm.xlu0 %187, %v170
    %v189 = vpop.permute.xlu0 %188
    %vm191 = vcmask 261120
    %v193 = vsel %vm191, %v163, 0
    %v196 = vsel %vm191, %v164, 0
    %v199 = vsel %vm191, %v165, 0
    %v202 = vsel %vm191, %v166, 0
    %204 = vmatprep.subr.mxu0 0.0
    %205 = vmatpush1.msra.mxu0 0.0
    %206 = vmatprep.subr.mxu0 0.0
    %207 = vmatpush1.msra.mxu0 0.0
    %208 = vmatprep.subr.mxu0 0.0
    %209 = vmatpush1.msra.mxu0 0.0
    %210 = vmatprep.subr.mxu0 0.0
    %211 = vmatpush1.msra.mxu0 0.0
    %212 = vmatprep.subr.mxu0 0.0
    %213 = vmatpush1.msra.mxu0 0.0
    %214 = vmatprep.subr.mxu0 0.0
    %215 = vmatpush1.msra.mxu0 0.0
    %216 = vmatprep.subr.mxu0 0.0
    %217 = vmatpush1.msra.mxu0 0.0
    %218 = vmatprep.subr.mxu0 0.0
    %219 = vmatpush1.msra.mxu0 0.0
    %220 = vmatprep.subr.mxu0 0.0
    %221 = vmatpush1.msra.mxu0 0.0
    %222 = vmatprep.subr.mxu0 0.0
    %223 = vmatpush1.msra.mxu0 0.0
    %224 = vmatprep.subr.mxu0 0.0
    %225 = vmatpush1.msra.mxu0 0.0
    %226 = vmatprep.subr.mxu0 0.0
    %227 = vmatpush1.msra.mxu0 0.0
    %228 = vmatprep.subr.mxu0 0.0
    %229 = vmatpush1.msra.mxu0 %v162
    %230 = vmatprep.subr.mxu0 0.0
    %231 = vmatpush1.msra.mxu0 %v161
    %232 = vmatprep.subr.mxu0 0.0
    %233 = vmatpush1.msra.mxu0 %v160
    %234 = vmatprep.subr.mxu0 0.0
    %235 = vmatpush1.msra.mxu0 %v159
    %236 = vmatprep.subr.mxu0 0.0
    %237 = vmatpush2.msra.mxu0 0.0
    %238 = vmatprep.subr.mxu0 0.0
    %239 = vmatpush2.msra.mxu0 0.0
    %240 = vmatprep.subr.mxu0 0.0
    %241 = vmatpush2.msra.mxu0 0.0
    %242 = vmatprep.subr.mxu0 0.0
    %243 = vmatpush2.msra.mxu0 0.0
    %244 = vmatprep.subr.mxu0 0.0
    %245 = vmatpush2.msra.mxu0 0.0
    %246 = vmatprep.subr.mxu0 0.0
    %247 = vmatpush2.msra.mxu0 0.0
    %248 = vmatprep.subr.mxu0 0.0
    %249 = vmatpush2.msra.mxu0 0.0
    %250 = vmatprep.subr.mxu0 0.0
    %251 = vmatpush2.msra.mxu0 0.0
    %252 = vmatprep.subr.mxu0 0.0
    %253 = vmatpush2.msra.mxu0 0.0
    %254 = vmatprep.subr.mxu0 0.0
    %255 = vmatpush2.msra.mxu0 0.0
    %256 = vmatprep.subr.mxu0 0.0
    %257 = vmatpush2.msra.mxu0 0.0
    %258 = vmatprep.subr.mxu0 0.0
    %259 = vmatpush2.msra.mxu0 0.0
    %260 = vmatprep.subr.mxu0 0.0
    %261 = vmatpush2.msra.mxu0 0.0
    %262 = vmatprep.subr.mxu0 0.0
    %263 = vmatpush2.msra.mxu0 0.0
    %264 = vmatprep.subr.mxu0 0.0
    %265 = vmatpush2.msra.mxu0 0.0
    %266 = vmatprep.subr.mxu0 0.0
    %267 = vmatpush2.msra.mxu0 0.0
    %268 = vmatprep.mubr.f32.mxu0 0.0
    %269 = vmatmul.mubr.f32.gmra.mxu0 %v193
    %v270 = vpop.f32.mrf.mxu0
    %v271 = vadd.f32 %v174, %v270
    %v272 = vpop.f32.mrf.mxu0
    %273 = vmatprep.mubr.f32.mxu0 0.0
    %274 = vmatmul.mubr.f32.gmra.mxu0 %v196
    %v275 = vpop.f32.mrf.mxu0
    %v276 = vadd.f32 %v179, %v275
    %v277 = vpop.f32.mrf.mxu0
    %278 = vmatprep.mubr.f32.mxu0 0.0
    %279 = vmatmul.mubr.f32.gmra.mxu0 %v199
    %v280 = vpop.f32.mrf.mxu0
    %v281 = vadd.f32 %v184, %v280
    %v282 = vpop.f32.mrf.mxu0
    %283 = vmatprep.mubr.f32.mxu0 0.0
    %284 = vmatmul.mubr.f32.gmra.mxu0 %v202
    %v285 = vpop.f32.mrf.mxu0
    %v286 = vadd.f32 %v189, %v285
    %v287 = vpop.f32.mrf.mxu0
    %288 = vdwg.mxu0
    %v289 = vmax.f32 %v271, 0.0
    %v290 = vmax.f32 %v276, 0.0
    %v291 = vmax.f32 %v281, 0.0
    %v292 = vmax.f32 %v286, 0.0
    %v293 = vld [vmem:[%s5] sm:$0xff]
    %v294 = vld [vmem:[%s5 + $0x8] sm:$0xff]
    %v295 = vld [vmem:[%s5 + $0x10] sm:$0xff]
    %v296 = vld [vmem:[%s5 + $0x18] sm:$0xff]
    %v297 = vld [vmem:[#allocation2] sm:$0x1]
    %299 = vset.pattern.permute.xlu0 0
    %300 = vperm.xlu0 %299, %v293
    %v301 = vpop.permute.xlu0 %300
    %304 = vset.pattern.permute.xlu0 0
    %305 = vperm.xlu0 %304, %v294
    %v306 = vpop.permute.xlu0 %305
    %309 = vset.pattern.permute.xlu0 0
    %310 = vperm.xlu0 %309, %v295
    %v311 = vpop.permute.xlu0 %310
    %314 = vset.pattern.permute.xlu0 0
    %315 = vperm.xlu0 %314, %v296
    %v316 = vpop.permute.xlu0 %315
    %v318 = vmul.f32 %v289, %v301
    %v319 = vmul.f32 %v290, %v306
    %v320 = vmul.f32 %v291, %v311
    %v321 = vmul.f32 %v292, %v316
    %vm322 = vcmask 64512
    %v323 = vsel %vm322, %v318, 0.0
    %v324 = vsel %vm322, %v319, 0.0
    %v325 = vadd.f32 %v323, %v324
    %v326 = vsel %vm322, %v320, 0.0
    %v327 = vadd.f32 %v325, %v326
    %v328 = vsel %vm322, %v321, 0.0
    %v329 = vadd.f32 %v327, %v328
    %v330 = vrot.slane %v329, 4
    %v331 = vadd.f32 %v329, %v330
    %v332 = vrot.slane %v331, 2
    %v333 = vadd.f32 %v331, %v332
    %v334 = vrot.slane %v333, 1
    %v335 = vadd.f32 %v333, %v334
    %337 = vset.pattern.permute.xlu0 0
    %338 = vperm.xlu0 %337, %v297
    %v339 = vpop.permute.xlu0 %338
    %v341 = vlaneseq
    %v342 = vshrl.u32 %v341, 7
    %v343 = vsub.s32 0, %v342
    %v344 = vrot.slane %v339, %v343
    %v345 = vadd.f32 %v335, %v344
    %vm346 = vcmask 57344
    %347 = vst.msk [vmem:[#allocation3] sm:$0x1] %vm346, %v345
    // Predicated region
    $region30: #{tpu_custom_call.1} parent=1 // pred_check
      _
    $region31: #{tpu_custom_call.1} parent=1 // pred_check_branch
      %349 = sbr.rel (0) target = $region33
    $region32: #{tpu_custom_call.1} parent=1 // pred_region
      %s351 = ssub.s32 16, 16
      %352 = vsyncadd [#allocation4], %s351
      %s354 = sshll.u32 [#allocation3], 4
      %s355 = int_to_ptr.vmem [resolvable:$true] %s354
      %357 = dma.vmem_to_hbm [thread:$0]  %s355, 16, %s7, [#allocation4]
    $region33: #{tpu_custom_call.1} parent=1 // pred_fallthru
      _
    // Predicated region
    $region34: #{tpu_custom_call.1} parent=1 // pred_check
      _
    $region35: #{tpu_custom_call.1} parent=1 // pred_check_branch
      %359 = sbr.rel (0) target = $region37
    $region36: #{tpu_custom_call.1} parent=1 // pred_region
      %360 = dma.done [#allocation4], 16
    $region37: #{tpu_custom_call.1} parent=1 // pred_fallthru
      _
    %361 = vsyncpa [#allocation4], 1

</llo_original>
